<compile_context>
chip_gen: v7x
topology: tpu7x:2x2x1
jax: 0.10.0
libtpu: 0.0.40
codegen_flags: <defaults>
</compile_context>

<pallas_src>
import jax
import jax.numpy as jnp
from jax.experimental import pallas as pl
from jax.experimental.pallas import tpu as pltpu


def _state_eval_kernel(xt_ref, w1_ref, b1_ref, w2_ref, b2_ref, w3_ref, b3_ref, o_ref):
    x_t = xt_ref[...]                                               # (D, TB) bf16

    # Layer 1: Linear(state_dim, 128) + ReLU.  (128, D) @ (D, TB) on the MXU, f32 acc.
    h1 = jnp.dot(w1_ref[...], x_t, preferred_element_type=jnp.float32) + b1_ref[...]
    h1 = jnp.maximum(h1, 0.0)                                       # (128, TB) f32

    # Layer 2: Linear(128, 128) + ReLU.  (128, 128) @ (128, TB), N = TB fills the MXU.
    h2 = jnp.dot(w2_ref[...], h1.astype(jnp.bfloat16),
                 preferred_element_type=jnp.float32) + b2_ref[...]
    h2 = jnp.maximum(h2, 0.0)                                       # (128, TB) f32

    # Layer 3: Linear(128, 1).  (1, 128) @ (128, TB) -> (1, TB), already lane-dense.
    logits = jnp.dot(w3_ref[...], h2.astype(jnp.bfloat16),
                     preferred_element_type=jnp.float32) + b3_ref[...]   # (1, TB) f32

    # Sigmoid: exp on the EUP, approx reciprocal on the EUP -> near-free.
    # (exp overflow to inf for very negative logits gives 1/inf -> 0, the correct limit.)
    o_ref[...] = pl.reciprocal(1.0 + jnp.exp(-logits), approx=True)


def state_evaluator_forward(state, params, *, tile_b=2048):
    """state: (B, state_dim) float32; params: PyTorch-layout weights.

    params: w1 (128, D), b1 (128, 1), w2 (128, 128), b2 (128, 1), w3 (1, 128), b3 (1, 1).
    tile_b is rounded to a multiple of 128 and capped so the batch grid has >= 2 steps
    whenever possible (v7x megacore); sweep 1024..4096 per generation.
    """
    B, D = state.shape

    # tile_b: multiple of 128, capped so the 1-D "parallel" grid has >= 2 steps when the
    # (128-rounded) batch allows it -- v7x has 2 TensorCores and a 1-step grid idles one.
    tile_b = max(128, (tile_b // 128) * 128)
    b_round = ((B + 127) // 128) * 128
    two_step_cap = max(128, ((b_round // 2) // 128) * 128)
    tile_b = min(tile_b, two_step_cap)
    n_tiles = pl.cdiv(B, tile_b)
    B_pad = n_tiles * tile_b

    # Batch-on-lanes input: x transposed to (D, B_pad) in bf16.  Transpose + cast is one
    # fused XLA copy of the small (B, D) input; the kernel then streams bf16 (64 B/row).
    x_t = state.T.astype(jnp.bfloat16)                      # (D, B)
    if B_pad != B:
        x_t = jnp.pad(x_t, ((0, 0), (0, B_pad - B)))        # padded cols sliced off below

    w1 = params["w1"].astype(jnp.bfloat16)                  # (128, D)   PyTorch layout
    w2 = params["w2"].astype(jnp.bfloat16)                  # (128, 128)
    w3 = params["w3"].astype(jnp.bfloat16)                  # (1, 128)
    b1 = params["b1"].reshape(128, 1).astype(jnp.float32)   # lane-broadcast columns
    b2 = params["b2"].reshape(128, 1).astype(jnp.float32)
    b3 = params["b3"].reshape(1, 1).astype(jnp.float32)

    out_row = pl.pallas_call(
        _state_eval_kernel,
        out_shape=jax.ShapeDtypeStruct((1, B_pad), jnp.float32),
        grid_spec=pltpu.PrefetchScalarGridSpec(
            num_scalar_prefetch=0,
            grid=(n_tiles,),
            in_specs=[
                pl.BlockSpec((D, tile_b), lambda i: (0, i)),    # x_t tile (bf16, streamed)
                pl.BlockSpec((128, D),    lambda i: (0, 0)),    # W1 (resident)
                pl.BlockSpec((128, 1),    lambda i: (0, 0)),    # b1
                pl.BlockSpec((128, 128),  lambda i: (0, 0)),    # W2
                pl.BlockSpec((128, 1),    lambda i: (0, 0)),    # b2
                pl.BlockSpec((1, 128),    lambda i: (0, 0)),    # W3
                pl.BlockSpec((1, 1),      lambda i: (0, 0)),    # b3
            ],
            out_specs=pl.BlockSpec((1, tile_b), lambda i: (0, i)),   # lane-dense output
        ),
        compiler_params=pltpu.CompilerParams(
            dimension_semantics=("parallel",)),
    )(x_t, w1, b1, w2, b2, w3, b3)

    # (1, B_pad) lane-dense row -> (B, 1) column expected by the module interface.
    return out_row[0, :B].reshape(B, 1)


def init_params(key, state_dim):
    """Deterministic init mimicking PyTorch nn.Linear default U[-1/sqrt(fan_in), 1/sqrt(fan_in)].

    Weights are kept in PyTorch (out, in) layout; biases as column vectors.
    """
    ks = jax.random.split(key, 6)

    def uinit(k, shape, fan_in):
        bound = 1.0 / jnp.sqrt(float(fan_in))
        return jax.random.uniform(k, shape, jnp.float32, -bound, bound)

    return {
        "w1": uinit(ks[0], (128, state_dim), state_dim),
        "b1": uinit(ks[1], (128, 1), state_dim),
        "w2": uinit(ks[2], (128, 128), 128),
        "b2": uinit(ks[3], (128, 1), 128),
        "w3": uinit(ks[4], (1, 128), 128),
        "b3": uinit(ks[5], (1, 1), 128),
    }


def reference_forward(state, p):
    h1 = jnp.maximum(state @ p["w1"].T + p["b1"].T, 0.0)
    h2 = jnp.maximum(h1 @ p["w2"].T + p["b2"].T, 0.0)
    logits = h2 @ p["w3"].T + p["b3"]
    return jax.nn.sigmoid(logits)


if __name__ == "__main__":
    key = jax.random.PRNGKey(0)
    k_params, k_state = jax.random.split(key)

    state_dim = 32
    batch = 200   # not a multiple of 128: exercises padding and the >=2-step grid path

    params = init_params(k_params, state_dim)
    state = jax.random.normal(k_state, (batch, state_dim), jnp.float32)

    out = state_evaluator_forward(state, params, tile_b=2048)
    out = jax.block_until_ready(out)

    ref = reference_forward(state, params)
    assert out.shape == (batch, 1), out.shape
    # bf16 MXU matmuls + approx reciprocal => loosen tolerance vs the f32 reference.
    assert jnp.allclose(out, ref, atol=2e-2, rtol=2e-2), (out, ref)

    print("KERNEL_OK")
</pallas_src>

<mosaic_0001>
module attributes {stable_mosaic.version = 11 : i64} {
  func.func @_state_eval_kernel(%arg0: i32, %arg1: memref<32x128xbf16, #tpu.memory_space<vmem>>, %arg2: memref<128x32xbf16, #tpu.memory_space<vmem>>, %arg3: memref<128x1xf32, #tpu.memory_space<vmem>>, %arg4: memref<128x128xbf16, #tpu.memory_space<vmem>>, %arg5: memref<128x1xf32, #tpu.memory_space<vmem>>, %arg6: memref<1x128xbf16, #tpu.memory_space<vmem>>, %arg7: memref<1x1xf32, #tpu.memory_space<vmem>>, %arg8: memref<1x128xf32, #tpu.memory_space<vmem>>) attributes {dimension_semantics = [#tpu.dimension_semantics<parallel>], iteration_bounds = array<i64: 2>, scalar_prefetch = 0 : i64, scratch_operands = 0 : i64, tpu.core_type = #tpu.core_type<tc>, window_params = [{transform_indices = @transform_0, window_bounds = array<i64: 32, 128>}, {pipeline_mode = #tpu.pipeline_mode<synchronous>, transform_indices = @transform_1, window_bounds = array<i64: 128, 32>}, {pipeline_mode = #tpu.pipeline_mode<synchronous>, transform_indices = @transform_2, window_bounds = array<i64: 128, 1>}, {pipeline_mode = #tpu.pipeline_mode<synchronous>, transform_indices = @transform_3, window_bounds = array<i64: 128, 128>}, {pipeline_mode = #tpu.pipeline_mode<synchronous>, transform_indices = @transform_4, window_bounds = array<i64: 128, 1>}, {pipeline_mode = #tpu.pipeline_mode<synchronous>, transform_indices = @transform_5, window_bounds = array<i64: 1, 128>}, {pipeline_mode = #tpu.pipeline_mode<synchronous>, transform_indices = @transform_6, window_bounds = array<i64: 1, 1>}, {transform_indices = @transform_7, window_bounds = array<i64: 1, 128>}]} {
    %c0 = arith.constant 0 : index
    %c0_0 = arith.constant 0 : index
    %0 = vector.load %arg1[%c0, %c0_0] : memref<32x128xbf16, #tpu.memory_space<vmem>>, vector<32x128xbf16>
    %c0_1 = arith.constant 0 : index
    %c0_2 = arith.constant 0 : index
    %1 = vector.load %arg2[%c0_1, %c0_2] : memref<128x32xbf16, #tpu.memory_space<vmem>>, vector<128x32xbf16>
    %cst = arith.constant dense<0.000000e+00> : vector<128x128xf32>
    %2 = tpu.matmul %1, %0, %cst {dimension_numbers = #tpu.dot_dimension_numbers<[1], [0], [0], [1], [0, 0, 1, 1], [], []>} : vector<128x32xbf16>, vector<32x128xbf16>, vector<128x128xf32> -> vector<128x128xf32>
    %c0_3 = arith.constant 0 : index
    %c0_4 = arith.constant 0 : index
    %3 = vector.load %arg3[%c0_3, %c0_4] : memref<128x1xf32, #tpu.memory_space<vmem>>, vector<128x1xf32>
    %4 = vector.broadcast %3 : vector<128x1xf32> to vector<128x128xf32>
    %5 = arith.addf %2, %4 : vector<128x128xf32>
    %cst_5 = arith.constant 0.000000e+00 : f32
    %6 = vector.broadcast %cst_5 : f32 to vector<128x128xf32>
    %7 = arith.maximumf %5, %6 : vector<128x128xf32>
    %c0_6 = arith.constant 0 : index
    %c0_7 = arith.constant 0 : index
    %8 = vector.load %arg4[%c0_6, %c0_7] : memref<128x128xbf16, #tpu.memory_space<vmem>>, vector<128x128xbf16>
    %9 = arith.truncf %7 : vector<128x128xf32> to vector<128x128xbf16>
    %cst_8 = arith.constant dense<0.000000e+00> : vector<128x128xf32>
    %10 = tpu.matmul %8, %9, %cst_8 {dimension_numbers = #tpu.dot_dimension_numbers<[1], [0], [0], [1], [0, 0, 1, 1], [], []>} : vector<128x128xbf16>, vector<128x128xbf16>, vector<128x128xf32> -> vector<128x128xf32>
    %c0_9 = arith.constant 0 : index
    %c0_10 = arith.constant 0 : index
    %11 = vector.load %arg5[%c0_9, %c0_10] : memref<128x1xf32, #tpu.memory_space<vmem>>, vector<128x1xf32>
    %12 = vector.broadcast %11 : vector<128x1xf32> to vector<128x128xf32>
    %13 = arith.addf %10, %12 : vector<128x128xf32>
    %cst_11 = arith.constant 0.000000e+00 : f32
    %14 = vector.broadcast %cst_11 : f32 to vector<128x128xf32>
    %15 = arith.maximumf %13, %14 : vector<128x128xf32>
    %c0_12 = arith.constant 0 : index
    %c0_13 = arith.constant 0 : index
    %16 = vector.load %arg6[%c0_12, %c0_13] : memref<1x128xbf16, #tpu.memory_space<vmem>>, vector<1x128xbf16>
    %17 = arith.truncf %15 : vector<128x128xf32> to vector<128x128xbf16>
    %cst_14 = arith.constant dense<0.000000e+00> : vector<1x128xf32>
    %18 = tpu.matmul %16, %17, %cst_14 {dimension_numbers = #tpu.dot_dimension_numbers<[1], [0], [0], [1], [0, 0, 1, 1], [], []>} : vector<1x128xbf16>, vector<128x128xbf16>, vector<1x128xf32> -> vector<1x128xf32>
    %c0_15 = arith.constant 0 : index
    %c0_16 = arith.constant 0 : index
    %19 = vector.load %arg7[%c0_15, %c0_16] : memref<1x1xf32, #tpu.memory_space<vmem>>, vector<1x1xf32>
    %20 = vector.broadcast %19 : vector<1x1xf32> to vector<1x128xf32>
    %21 = arith.addf %18, %20 : vector<1x128xf32>
    %cst_17 = arith.constant 0.000000e+00 : f32
    %22 = vector.broadcast %cst_17 : f32 to vector<1x128xf32>
    %23 = arith.subf %22, %21 : vector<1x128xf32>
    %24 = math.exp %23 : vector<1x128xf32>
    %cst_18 = arith.constant 1.000000e+00 : f32
    %25 = vector.broadcast %cst_18 : f32 to vector<1x128xf32>
    %26 = arith.addf %25, %24 : vector<1x128xf32>
    %27 = tpu.reciprocal %26 {approx = true} : vector<1x128xf32> -> vector<1x128xf32>
    %c0_19 = arith.constant 0 : index
    %c0_20 = arith.constant 0 : index
    %28 = vector.load %arg8[%c0_19, %c0_20] : memref<1x128xf32, #tpu.memory_space<vmem>>, vector<1x128xf32>
    tpu.vector_store %arg8[%c0_19, %c0_20], %27 {strides = array<i32>} : memref<1x128xf32, #tpu.memory_space<vmem>>, vector<1x128xf32>,
    return
  }
  func.func @transform_0(%arg0: i32) -> (i32, i32) {
    %c0_i32 = arith.constant 0 : i32
    %c0_i32_0 = arith.constant 0 : i32
    return %c0_i32, %arg0 : i32, i32
  }
  func.func @transform_1(%arg0: i32) -> (i32, i32) {
    %c0_i32 = arith.constant 0 : i32
    %c0_i32_0 = arith.constant 0 : i32
    %c0_i32_1 = arith.constant 0 : i32
    return %c0_i32, %c0_i32_0 : i32, i32
  }
  func.func @transform_2(%arg0: i32) -> (i32, i32) {
    %c0_i32 = arith.constant 0 : i32
    %c0_i32_0 = arith.constant 0 : i32
    %c0_i32_1 = arith.constant 0 : i32
    return %c0_i32, %c0_i32_0 : i32, i32
  }
  func.func @transform_3(%arg0: i32) -> (i32, i32) {
    %c0_i32 = arith.constant 0 : i32
    %c0_i32_0 = arith.constant 0 : i32
    %c0_i32_1 = arith.constant 0 : i32
    return %c0_i32, %c0_i32_0 : i32, i32
  }
  func.func @transform_4(%arg0: i32) -> (i32, i32) {
    %c0_i32 = arith.constant 0 : i32
    %c0_i32_0 = arith.constant 0 : i32
    %c0_i32_1 = arith.constant 0 : i32
    return %c0_i32, %c0_i32_0 : i32, i32
  }
  func.func @transform_5(%arg0: i32) -> (i32, i32) {
    %c0_i32 = arith.constant 0 : i32
    %c0_i32_0 = arith.constant 0 : i32
    %c0_i32_1 = arith.constant 0 : i32
    return %c0_i32, %c0_i32_0 : i32, i32
  }
  func.func @transform_6(%arg0: i32) -> (i32, i32) {
    %c0_i32 = arith.constant 0 : i32
    %c0_i32_0 = arith.constant 0 : i32
    %c0_i32_1 = arith.constant 0 : i32
    return %c0_i32, %c0_i32_0 : i32, i32
  }
  func.func @transform_7(%arg0: i32) -> (i32, i32) {
    %c0_i32 = arith.constant 0 : i32
    %c0_i32_0 = arith.constant 0 : i32
    return %c0_i32, %arg0 : i32, i32
  }
}

</mosaic_0001>

<llo_original>
// kernel: tpu_custom_call.1
$region0: #{tpu_custom_call.1}
  #allocation0 [shape = 'u32[]', space=smem, size = 0x4, offset = 0x4, fixed_abs, tag = 'smem constant byte address 0x4 - core index']
  #allocation1 [shape = 'u32[144,128]{1,0:T(1,128)}', space=vmem, size = 0x12000, scoped, tag = 'internal scratch']
  #allocation2 [shape = 'f32[1,1]{1,0:T(1,128)S(1)}', space=vmem, size = 0x200, scoped, tag = 'scoped memory for tpu_custom_call.1']
  %s0 = inlined_call_operand.vmem [shape: bf16[32,256], index: 0, kind: input, shape index: {}]
  %s1 = inlined_call_operand.vmem [shape: bf16[128,32], index: 1, kind: input, shape index: {}]
  %s2 = inlined_call_operand.vmem [shape: f32[128,1], index: 2, kind: input, shape index: {}]
  %s3 = inlined_call_operand.vmem [shape: bf16[128,128], index: 3, kind: input, shape index: {}]
  %s4 = inlined_call_operand.vmem [shape: f32[128,1], index: 4, kind: input, shape index: {}]
  %s5 = inlined_call_operand.vmem [shape: bf16[1,128], index: 5, kind: input, shape index: {}]
  %s6 = inlined_call_operand.<no memory space> [shape: f32[1,1], index: 6, kind: input, shape index: {}]
  %s7 = inlined_call_operand.hbm [shape: f32[1,256], index: 7, kind: output, shape index: {}]
  %s8 = sld [smem:[#allocation0]]
  $region102: #{tpu_custom_call.1} parent=0
    _
  %s10 = ssub.s32 1, %s8
  %s11 = scalar_select 0, %s10, %s8
  %v12 = vstv %s6
  %13 = vst [vmem:[#allocation2] sm:$0x1] %v12
  $region1: #{tpu_custom_call.1} parent=0
    #allocation3 [shape = 'u8[16384]{0}', space=vmem, size = 0x4000, scoped, tag = 'input window, operand 0']
    #allocation4 [shape = 'u8[1024]{0}', space=vmem, size = 0x400, scoped, tag = 'output window, operand 0']
    #allocation5 [shape = 's32[2]{0}', space=sflag, size = 0x8, scoped, tag = 'scoped memory for tpu_custom_call.1']
    %14 = vsyncpa [#allocation5], 0
    %s15 = scalar_lea.sflag [#allocation5], 1
    %16 = vsyncpa %s15, 0
    loop: start=0, step=1, limit=4
    $region2: #{tpu_custom_call.1} parent=1 // loop_pre_header
      _
    $region3: #{tpu_custom_call.1} parent=1 // loop_header
      %s18 = sphi 0, %s22
      %p19 = scmp.ge.s32.totalorder %s18, 4
      %s28 = sphi 0, %s30
      %s31 = sphi 0, %s28
      %s32 = sphi 0, %s31
      %s48 = sphi 0, %s32
      %s52 = sphi 0, %s52
      %s54 = sphi 0, %s52
      %s55 = sphi 0, %s54
      %s69 = sphi 0, %s55
      %s73 = sphi 0, %s73
      %s75 = sphi 0, %s73
      %s76 = sphi 0, %s75
      %s90 = sphi 0, %s76
      %s94 = sphi 0, %s94
      %s96 = sphi 0, %s94
      %s97 = sphi 0, %s96
      %s111 = sphi 0, %s97
      %s115 = sphi 0, %s115
      %s117 = sphi 0, %s115
      %s118 = sphi 0, %s117
      %s132 = sphi 0, %s118
      %s136 = sphi 0, %s136
      %s138 = sphi 0, %s136
      %s139 = sphi 0, %s138
      %s153 = sphi 0, %s139
      %s157 = sphi 0, %s157
      %s159 = sphi 0, %s157
      %s160 = sphi 0, %s159
      %s174 = sphi 0, %s160
      %s180 = sphi 0, %s182
      %s183 = sphi 0, %s180
      %s184 = sphi 0, %s183
      %s200 = sphi 0, %s184
    $region4: #{tpu_custom_call.1} parent=1 // loop_header_branch
      %21 = sbr.rel (%p19) target = $region8
    $region5: #{tpu_custom_call.1} parent=1 // loop_body
      %s23 = ssub.s32 %s18, 1
      %s24 = ssub.s32 %s18, 2
      %s25 = sadd.s32 %s18, 1
      %s26 = ssub.s32 %s18, %s25
      %p27 = scmp.eq.s32.totalorder %s26, 0
      %s29 = sadd.s32 %s28, 1
      %s30 = scalar_select %p27, %s28, %s29
      %p33 = pneg %p27
      %p34 = scmp.eq.s32.totalorder %s18, 1
      %p35 = por %p33, %p34
      %p36 = scmp.ne.s32.totalorder %s28, %s31
      %p37 = scmp.eq.s32.totalorder %s18, 0
      %p38 = por %p36, %p37
      %p39 = scmp.ne.s32.totalorder %s28, %s31
      %p40 = scmp.eq.s32.totalorder %s23, 1
      %p41 = por %p39, %p40
      %p42 = scmp.ne.s32.totalorder %s31, %s32
      %p43 = scmp.eq.s32.totalorder %s23, 0
      %p44 = por %p42, %p43
      %p45 = scmp.ne.s32.totalorder %s31, %s32
      %p46 = scmp.eq.s32.totalorder %s24, 1
      %p47 = por %p45, %p46
      %p49 = scmp.ne.s32.totalorder %s32, %s48
      %p50 = scmp.eq.s32.totalorder %s24, 0
      %p51 = por %p49, %p50
      %s53 = sadd.s32 %s52, 1
      %p56 = scmp.eq.s32.totalorder %s18, 1
      %p57 = scmp.ne.s32.totalorder %s52, %s54
      %p58 = scmp.eq.s32.totalorder %s18, 0
      %p59 = por %p57, %p58
      %p60 = scmp.ne.s32.totalorder %s52, %s54
      %p61 = scmp.eq.s32.totalorder %s23, 1
      %p62 = por %p60, %p61
      %p63 = scmp.ne.s32.totalorder %s54, %s55
      %p64 = scmp.eq.s32.totalorder %s23, 0
      %p65 = por %p63, %p64
      %p66 = scmp.ne.s32.totalorder %s54, %s55
      %p67 = scmp.eq.s32.totalorder %s24, 1
      %p68 = por %p66, %p67
      %p70 = scmp.ne.s32.totalorder %s55, %s69
      %p71 = scmp.eq.s32.totalorder %s24, 0
      %p72 = por %p70, %p71
      %s74 = sadd.s32 %s73, 1
      %p77 = scmp.eq.s32.totalorder %s18, 1
      %p78 = scmp.ne.s32.totalorder %s73, %s75
      %p79 = scmp.eq.s32.totalorder %s18, 0
      %p80 = por %p78, %p79
      %p81 = scmp.ne.s32.totalorder %s73, %s75
      %p82 = scmp.eq.s32.totalorder %s23, 1
      %p83 = por %p81, %p82
      %p84 = scmp.ne.s32.totalorder %s75, %s76
      %p85 = scmp.eq.s32.totalorder %s23, 0
      %p86 = por %p84, %p85
      %p87 = scmp.ne.s32.totalorder %s75, %s76
      %p88 = scmp.eq.s32.totalorder %s24, 1
      %p89 = por %p87, %p88
      %p91 = scmp.ne.s32.totalorder %s76, %s90
      %p92 = scmp.eq.s32.totalorder %s24, 0
      %p93 = por %p91, %p92
      %s95 = sadd.s32 %s94, 1
      %p98 = scmp.eq.s32.totalorder %s18, 1
      %p99 = scmp.ne.s32.totalorder %s94, %s96
      %p100 = scmp.eq.s32.totalorder %s18, 0
      %p101 = por %p99, %p100
      %p102 = scmp.ne.s32.totalorder %s94, %s96
      %p103 = scmp.eq.s32.totalorder %s23, 1
      %p104 = por %p102, %p103
      %p105 = scmp.ne.s32.totalorder %s96, %s97
      %p106 = scmp.eq.s32.totalorder %s23, 0
      %p107 = por %p105, %p106
      %p108 = scmp.ne.s32.totalorder %s96, %s97
      %p109 = scmp.eq.s32.totalorder %s24, 1
      %p110 = por %p108, %p109
      %p112 = scmp.ne.s32.totalorder %s97, %s111
      %p113 = scmp.eq.s32.totalorder %s24, 0
      %p114 = por %p112, %p113
      %s116 = sadd.s32 %s115, 1
      %p119 = scmp.eq.s32.totalorder %s18, 1
      %p120 = scmp.ne.s32.totalorder %s115, %s117
      %p121 = scmp.eq.s32.totalorder %s18, 0
      %p122 = por %p120, %p121
      %p123 = scmp.ne.s32.totalorder %s115, %s117
      %p124 = scmp.eq.s32.totalorder %s23, 1
      %p125 = por %p123, %p124
      %p126 = scmp.ne.s32.totalorder %s117, %s118
      %p127 = scmp.eq.s32.totalorder %s23, 0
      %p128 = por %p126, %p127
      %p129 = scmp.ne.s32.totalorder %s117, %s118
      %p130 = scmp.eq.s32.totalorder %s24, 1
      %p131 = por %p129, %p130
      %p133 = scmp.ne.s32.totalorder %s118, %s132
      %p134 = scmp.eq.s32.totalorder %s24, 0
      %p135 = por %p133, %p134
      %s137 = sadd.s32 %s136, 1
      %p140 = scmp.eq.s32.totalorder %s18, 1
      %p141 = scmp.ne.s32.totalorder %s136, %s138
      %p142 = scmp.eq.s32.totalorder %s18, 0
      %p143 = por %p141, %p142
      %p144 = scmp.ne.s32.totalorder %s136, %s138
      %p145 = scmp.eq.s32.totalorder %s23, 1
      %p146 = por %p144, %p145
      %p147 = scmp.ne.s32.totalorder %s138, %s139
      %p148 = scmp.eq.s32.totalorder %s23, 0
      %p149 = por %p147, %p148
      %p150 = scmp.ne.s32.totalorder %s138, %s139
      %p151 = scmp.eq.s32.totalorder %s24, 1
      %p152 = por %p150, %p151
      %p154 = scmp.ne.s32.totalorder %s139, %s153
      %p155 = scmp.eq.s32.totalorder %s24, 0
      %p156 = por %p154, %p155
      %s158 = sadd.s32 %s157, 1
      %p161 = scmp.eq.s32.totalorder %s18, 1
      %p162 = scmp.ne.s32.totalorder %s157, %s159
      %p163 = scmp.eq.s32.totalorder %s18, 0
      %p164 = por %p162, %p163
      %p165 = scmp.ne.s32.totalorder %s157, %s159
      %p166 = scmp.eq.s32.totalorder %s23, 1
      %p167 = por %p165, %p166
      %p168 = scmp.ne.s32.totalorder %s159, %s160
      %p169 = scmp.eq.s32.totalorder %s23, 0
      %p170 = por %p168, %p169
      %p171 = scmp.ne.s32.totalorder %s159, %s160
      %p172 = scmp.eq.s32.totalorder %s24, 1
      %p173 = por %p171, %p172
      %p175 = scmp.ne.s32.totalorder %s160, %s174
      %p176 = scmp.eq.s32.totalorder %s24, 0
      %p177 = por %p175, %p176
      %s178 = ssub.s32 %s18, %s25
      %p179 = scmp.eq.s32.totalorder %s178, 0
      %s181 = sadd.s32 %s180, 1
      %s182 = scalar_select %p179, %s180, %s181
      %p185 = pneg %p179
      %p186 = scmp.eq.s32.totalorder %s18, 1
      %p187 = por %p185, %p186
      %p188 = scmp.ne.s32.totalorder %s180, %s183
      %p189 = scmp.eq.s32.totalorder %s18, 0
      %p190 = por %p188, %p189
      %p191 = scmp.ne.s32.totalorder %s180, %s183
      %p192 = scmp.eq.s32.totalorder %s23, 1
      %p193 = por %p191, %p192
      %p194 = scmp.ne.s32.totalorder %s183, %s184
      %p195 = scmp.eq.s32.totalorder %s23, 0
      %p196 = por %p194, %p195
      %p197 = scmp.ne.s32.totalorder %s183, %s184
      %p198 = scmp.eq.s32.totalorder %s24, 1
      %p199 = por %p197, %p198
      %p201 = scmp.ne.s32.totalorder %s184, %s200
      %p202 = scmp.eq.s32.totalorder %s24, 0
      %p203 = por %p201, %p202
      %p204 = scmp.le.s32.totalorder 1, %s18
      %p205 = scmp.lt.s32.totalorder %s18, 3
      %p206 = pnand %p204, %p205
      %p207 = pneg %p206
      // Predicated region
      $region9: #{tpu_custom_call.1} parent=5 // pred_check
        _
      $region10: #{tpu_custom_call.1} parent=5 // pred_check_branch
        %209 = sbr.rel (%p206) target = $region12
      $region11: #{tpu_custom_call.1} parent=5 // pred_region
        %s210 = ssub.s32 %s18, 1
        // Predicated region
        $region13: #{tpu_custom_call.1} parent=11 // pred_check
          %p211 = pneg %p65
        $region14: #{tpu_custom_call.1} parent=11 // pred_check_branch
          %213 = sbr.rel (%p211) target = $region16
        $region15: #{tpu_custom_call.1} parent=11 // pred_region
          _
        $region16: #{tpu_custom_call.1} parent=11 // pred_fallthru
          _
        // Predicated region
        $region17: #{tpu_custom_call.1} parent=11 // pred_check
          %p214 = pneg %p86
        $region18: #{tpu_custom_call.1} parent=11 // pred_check_branch
          %216 = sbr.rel (%p214) target = $region20
        $region19: #{tpu_custom_call.1} parent=11 // pred_region
          _
        $region20: #{tpu_custom_call.1} parent=11 // pred_fallthru
          _
        // Predicated region
        $region21: #{tpu_custom_call.1} parent=11 // pred_check
          %p217 = pneg %p107
        $region22: #{tpu_custom_call.1} parent=11 // pred_check_branch
          %219 = sbr.rel (%p217) target = $region24
        $region23: #{tpu_custom_call.1} parent=11 // pred_region
          _
        $region24: #{tpu_custom_call.1} parent=11 // pred_fallthru
          _
        // Predicated region
        $region25: #{tpu_custom_call.1} parent=11 // pred_check
          %p220 = pneg %p128
        $region26: #{tpu_custom_call.1} parent=11 // pred_check_branch
          %222 = sbr.rel (%p220) target = $region28
        $region27: #{tpu_custom_call.1} parent=11 // pred_region
          _
        $region28: #{tpu_custom_call.1} parent=11 // pred_fallthru
          _
        // Predicated region
        $region29: #{tpu_custom_call.1} parent=11 // pred_check
          %p223 = pneg %p149
        $region30: #{tpu_custom_call.1} parent=11 // pred_check_branch
          %225 = sbr.rel (%p223) target = $region32
        $region31: #{tpu_custom_call.1} parent=11 // pred_region
          _
        $region32: #{tpu_custom_call.1} parent=11 // pred_fallthru
          _
        // Predicated region
        $region33: #{tpu_custom_call.1} parent=11 // pred_check
          %p226 = pneg %p170
        $region34: #{tpu_custom_call.1} parent=11 // pred_check_branch
          %228 = sbr.rel (%p226) target = $region36
        $region35: #{tpu_custom_call.1} parent=11 // pred_region
          _
        $region36: #{tpu_custom_call.1} parent=11 // pred_fallthru
          _
      $region12: #{tpu_custom_call.1} parent=5 // pred_fallthru
        _
      %p229 = scmp.lt.s32.totalorder %s18, 2
      // Predicated region
      $region37: #{tpu_custom_call.1} parent=5 // pred_check
        %p230 = pneg %p229
      $region38: #{tpu_custom_call.1} parent=5 // pred_check_branch
        %232 = sbr.rel (%p230) target = $region40
      $region39: #{tpu_custom_call.1} parent=5 // pred_region
        // Predicated region
        $region41: #{tpu_custom_call.1} parent=39 // pred_check
          %p233 = pneg %p38
        $region42: #{tpu_custom_call.1} parent=39 // pred_check_branch
          %235 = sbr.rel (%p233) target = $region44
        $region43: #{tpu_custom_call.1} parent=39 // pred_region
          %s236 = sand.u32 %s28, 1
          %s237 = sand.u32 %s28, 1
          %s238 = smul.addr %s237, 16
          %s239 = scalar_lea.vmem [#allocation3], %s238
          %s240 = smul.addr %s18, 4
          %s241 = scalar_lea.vmem %s0, %s240
          // Predicated region
          $region45: #{tpu_custom_call.1} parent=43 // pred_check
            _
          $region46: #{tpu_custom_call.1} parent=43 // pred_check_branch
            %243 = sbr.rel (0) target = $region48
          $region47: #{tpu_custom_call.1} parent=43 // pred_region
            // Predicated region
            $region49: #{tpu_custom_call.1} parent=47 // pred_check
              _
            $region50: #{tpu_custom_call.1} parent=47 // pred_check_branch
              %245 = sbr.rel target = $region52
            $region51: #{tpu_custom_call.1} parent=47 // pred_region
              // Predicated region
              $region64: #{tpu_custom_call.1} parent=51 // pred_check
                _
              $region65: #{tpu_custom_call.1} parent=51 // pred_check_branch
                %266 = sbr.rel (0) target = $region67
              $region66: #{tpu_custom_call.1} parent=51 // pred_region
                loop: start=0, step=1, limit=1
                $region68: #{tpu_custom_call.1} parent=66 // loop_pre_header
                  _
                $region69: #{tpu_custom_call.1} parent=66 // loop_header
                  %s268 = sphi 0, %s272
                  %p269 = scmp.ge.s32.totalorder %s268, 1
                  %s273 = sphi %s241, %s241
                  %s274 = sphi %s239, %s239
                $region70: #{tpu_custom_call.1} parent=66 // loop_header_branch
                  %271 = sbr.rel (%p269) target = $region74
                $region71: #{tpu_custom_call.1} parent=66 // loop_body
                  _
                $region72: #{tpu_custom_call.1} parent=66 // loop_footer
                  %s272 = sadd.s32 1, %s268
                $region73: #{tpu_custom_call.1} parent=66 // loop_footer_branch
                  %267 = sbr.rel target = $region69
                $region74: #{tpu_custom_call.1} parent=66 // loop_exit
                  _
                loop: start=0, step=1, limit=1
                $region75: #{tpu_custom_call.1} parent=66 // loop_pre_header
                  _
                $region76: #{tpu_custom_call.1} parent=66 // loop_header
                  %s277 = sphi 0, %s281
                  %p278 = scmp.ge.s32.totalorder %s277, 1
                  %s282 = sphi %s241, %s241
                  %s283 = sphi %s239, %s239
                $region77: #{tpu_custom_call.1} parent=66 // loop_header_branch
                  %280 = sbr.rel (%p278) target = $region81
                $region78: #{tpu_custom_call.1} parent=66 // loop_body
                  %v284 = vld [vmem:[%s282] sm:$0xf]
                  %285 = vst [vmem:[%s283] sm:$0xf] %v284
                  %v286 = vld [vmem:[%s282 + $0x8] sm:$0xf]
                  %287 = vst [vmem:[%s283 + $0x4] sm:$0xf] %v286
                  %v288 = vld [vmem:[%s282 + $0x10] sm:$0xf]
                  %289 = vst [vmem:[%s283 + $0x8] sm:$0xf] %v288
                  %v290 = vld [vmem:[%s282 + $0x18] sm:$0xf]
                  %291 = vst [vmem:[%s283 + $0xc] sm:$0xf] %v290
                $region79: #{tpu_custom_call.1} parent=66 // loop_footer
                  %s281 = sadd.s32 1, %s277
                $region80: #{tpu_custom_call.1} parent=66 // loop_footer_branch
                  %276 = sbr.rel target = $region76
                $region81: #{tpu_custom_call.1} parent=66 // loop_exit
                  _
              $region67: #{tpu_custom_call.1} parent=51 // pred_fallthru
                _
            $region52: #{tpu_custom_call.1} parent=47 // pred_fallthru
              _
            // Predicated region
            $region53: #{tpu_custom_call.1} parent=47 // pred_check
              _
            $region54: #{tpu_custom_call.1} parent=47 // pred_check_branch
              %247 = sbr.rel (0) target = $region56
            $region55: #{tpu_custom_call.1} parent=47 // pred_region
              loop: start=0, step=1, limit=1
              $region57: #{tpu_custom_call.1} parent=55 // loop_pre_header
                _
              $region58: #{tpu_custom_call.1} parent=55 // loop_header
                %s250 = sphi 0, %s254
                %p251 = scmp.ge.s32.totalorder %s250, 1
                %s255 = sphi %s241, %s241
                %s256 = sphi %s239, %s239
              $region59: #{tpu_custom_call.1} parent=55 // loop_header_branch
                %253 = sbr.rel (%p251) target = $region63
              $region60: #{tpu_custom_call.1} parent=55 // loop_body
                %v257 = vld [vmem:[%s255] sm:$0xf]
                %258 = vst [vmem:[%s256] sm:$0xf] %v257
                %v259 = vld [vmem:[%s255 + $0x8] sm:$0xf]
                %260 = vst [vmem:[%s256 + $0x4] sm:$0xf] %v259
                %v261 = vld [vmem:[%s255 + $0x10] sm:$0xf]
                %262 = vst [vmem:[%s256 + $0x8] sm:$0xf] %v261
                %v263 = vld [vmem:[%s255 + $0x18] sm:$0xf]
                %264 = vst [vmem:[%s256 + $0xc] sm:$0xf] %v263
              $region61: #{tpu_custom_call.1} parent=55 // loop_footer
                %s254 = sadd.s32 1, %s250
              $region62: #{tpu_custom_call.1} parent=55 // loop_footer_branch
                %249 = sbr.rel target = $region58
              $region63: #{tpu_custom_call.1} parent=55 // loop_exit
                _
            $region56: #{tpu_custom_call.1} parent=47 // pred_fallthru
              _
          $region48: #{tpu_custom_call.1} parent=43 // pred_fallthru
            _
          %292 = vnop
        $region44: #{tpu_custom_call.1} parent=39 // pred_fallthru
          _
      $region40: #{tpu_custom_call.1} parent=5 // pred_fallthru
        _
      %p293 = scmp.le.s32.totalorder 1, %s18
      %p294 = scmp.lt.s32.totalorder %s18, 3
      %p295 = pnand %p293, %p294
      %p296 = pneg %p295
      // Predicated region
      $region82: #{tpu_custom_call.1} parent=5 // pred_check
        _
      $region83: #{tpu_custom_call.1} parent=5 // pred_check_branch
        %298 = sbr.rel (%p295) target = $region85
      $region84: #{tpu_custom_call.1} parent=5 // pred_region
        %s299 = ssub.s32 %s18, 1
        %s300 = sand.u32 %s31, 1
        %s301 = sand.u32 %s31, 1
        %s302 = smul.addr %s301, 16
        %s303 = scalar_lea.vmem [#allocation3], %s302
        // Predicated region
        $region86: #{tpu_custom_call.1} parent=84 // pred_check
          %p304 = pneg %p44
        $region87: #{tpu_custom_call.1} parent=84 // pred_check_branch
          %306 = sbr.rel (%p304) target = $region89
        $region88: #{tpu_custom_call.1} parent=84 // pred_region
          _
        $region89: #{tpu_custom_call.1} parent=84 // pred_fallthru
          _
        %s307 = sand.u32 %s31, 1
        %s308 = sand.u32 %s31, 1
        %s309 = smul.addr %s308, 16
        %s310 = scalar_lea.vmem [#allocation3], %s309
        %p311 = pneg %p44
        %p312 = pneg %p41
        %p313 = pneg %p65
        %p314 = pneg %p62
        %p315 = pneg %p86
        %p316 = pneg %p83
        %p317 = pneg %p107
        %p318 = pneg %p104
        %p319 = pneg %p128
        %p320 = pneg %p125
        %p321 = pneg %p149
        %p322 = pneg %p146
        %p323 = pneg %p170
        %p324 = pneg %p167
        %p325 = pneg %p196
        %p326 = pneg %p193
        %s327 = sand.u32 %s183, 1
        %s328 = scalar_lea.sflag [#allocation5], %s327
        %s329 = sand.u32 %s183, 1
        %s330 = scalar_lea.vmem [#allocation4], %s329
        %v332 = vld [vmem:[%s303] sm:$0xf]
        %v333 = vld [vmem:[%s303 + $0x4] sm:$0xf]
        %v334 = vld [vmem:[%s303 + $0x8] sm:$0xf]
        %v335 = vld [vmem:[%s303 + $0xc] sm:$0xf]
        %v336 = vld [vmem:[%s1] sm:$0xf]
        %v337 = vld [vmem:[%s1 + $0x4] sm:$0xf]
        %v338 = vld [vmem:[%s1 + $0x8] sm:$0xf]
        %v339 = vld [vmem:[%s1 + $0xc] sm:$0xf]
        %v340 = vld [vmem:[%s1 + $0x10] sm:$0xf]
        %v341 = vld [vmem:[%s1 + $0x14] sm:$0xf]
        %v342 = vld [vmem:[%s1 + $0x18] sm:$0xf]
        %v343 = vld [vmem:[%s1 + $0x1c] sm:$0xf]
        %v344 = vld [vmem:[%s1 + $0x20] sm:$0xf]
        %v345 = vld [vmem:[%s1 + $0x24] sm:$0xf]
        %v346 = vld [vmem:[%s1 + $0x28] sm:$0xf]
        %v347 = vld [vmem:[%s1 + $0x2c] sm:$0xf]
        %v348 = vld [vmem:[%s1 + $0x30] sm:$0xf]
        %v349 = vld [vmem:[%s1 + $0x34] sm:$0xf]
        %v350 = vld [vmem:[%s1 + $0x38] sm:$0xf]
        %v351 = vld [vmem:[%s1 + $0x3c] sm:$0xf]
        %v352 = vld [vmem:[%s2] sm:$0xff]
        %v353 = vld [vmem:[%s2 + $0x8] sm:$0xff]
        %v354 = vld [vmem:[%s2 + $0x10] sm:$0xff]
        %v355 = vld [vmem:[%s2 + $0x18] sm:$0xff]
        %v356 = vld [vmem:[%s2 + $0x20] sm:$0xff]
        %v357 = vld [vmem:[%s2 + $0x28] sm:$0xff]
        %v358 = vld [vmem:[%s2 + $0x30] sm:$0xff]
        %v359 = vld [vmem:[%s2 + $0x38] sm:$0xff]
        %v360 = vld [vmem:[%s2 + $0x40] sm:$0xff]
        %v361 = vld [vmem:[%s2 + $0x48] sm:$0xff]
        %v362 = vld [vmem:[%s2 + $0x50] sm:$0xff]
        %v363 = vld [vmem:[%s2 + $0x58] sm:$0xff]
        %v364 = vld [vmem:[%s2 + $0x60] sm:$0xff]
        %v365 = vld [vmem:[%s2 + $0x68] sm:$0xff]
        %v366 = vld [vmem:[%s2 + $0x70] sm:$0xff]
        %v367 = vld [vmem:[%s2 + $0x78] sm:$0xff]
        %369 = vset.pattern.permute.xlu0 0
        %370 = vperm.xlu0 %369, %v352
        %v371 = vpop.permute.xlu0 %370
        %374 = vset.pattern.permute.xlu0 0
        %375 = vperm.xlu0 %374, %v353
        %v376 = vpop.permute.xlu0 %375
        %379 = vset.pattern.permute.xlu0 0
        %380 = vperm.xlu0 %379, %v354
        %v381 = vpop.permute.xlu0 %380
        %384 = vset.pattern.permute.xlu0 0
        %385 = vperm.xlu0 %384, %v355
        %v386 = vpop.permute.xlu0 %385
        %389 = vset.pattern.permute.xlu0 0
        %390 = vperm.xlu0 %389, %v356
        %v391 = vpop.permute.xlu0 %390
        %394 = vset.pattern.permute.xlu0 0
        %395 = vperm.xlu0 %394, %v357
        %v396 = vpop.permute.xlu0 %395
        %399 = vset.pattern.permute.xlu0 0
        %400 = vperm.xlu0 %399, %v358
        %v401 = vpop.permute.xlu0 %400
        %404 = vset.pattern.permute.xlu0 0
        %405 = vperm.xlu0 %404, %v359
        %v406 = vpop.permute.xlu0 %405
        %409 = vset.pattern.permute.xlu0 0
        %410 = vperm.xlu0 %409, %v360
        %v411 = vpop.permute.xlu0 %410
        %414 = vset.pattern.permute.xlu0 0
        %415 = vperm.xlu0 %414, %v361
        %v416 = vpop.permute.xlu0 %415
        %419 = vset.pattern.permute.xlu0 0
        %420 = vperm.xlu0 %419, %v362
        %v421 = vpop.permute.xlu0 %420
        %424 = vset.pattern.permute.xlu0 0
        %425 = vperm.xlu0 %424, %v363
        %v426 = vpop.permute.xlu0 %425
        %429 = vset.pattern.permute.xlu0 0
        %430 = vperm.xlu0 %429, %v364
        %v431 = vpop.permute.xlu0 %430
        %434 = vset.pattern.permute.xlu0 0
        %435 = vperm.xlu0 %434, %v365
        %v436 = vpop.permute.xlu0 %435
        %439 = vset.pattern.permute.xlu0 0
        %440 = vperm.xlu0 %439, %v366
        %v441 = vpop.permute.xlu0 %440
        %444 = vset.pattern.permute.xlu0 0
        %445 = vperm.xlu0 %444, %v367
        %v446 = vpop.permute.xlu0 %445
        %v464 = vunpack.c.l.b16 %v336
        %v465 = vunpack.c.l.b16 %v337
        %v466 = vunpack.c.l.b16 %v338
        %v467 = vunpack.c.l.b16 %v339
        %v468 = vunpack.c.l.b16 %v340
        %v469 = vunpack.c.l.b16 %v341
        %v470 = vunpack.c.l.b16 %v342
        %v471 = vunpack.c.l.b16 %v343
        %v472 = vunpack.c.l.b16 %v344
        %v473 = vunpack.c.l.b16 %v345
        %v474 = vunpack.c.l.b16 %v346
        %v475 = vunpack.c.l.b16 %v347
        %v476 = vunpack.c.l.b16 %v348
        %v477 = vunpack.c.l.b16 %v349
        %v478 = vunpack.c.l.b16 %v350
        %v479 = vunpack.c.l.b16 %v351
        %v480 = vpack.c.b16 %v465, %v464
        %v481 = vpack.c.b16 %v467, %v466
        %v482 = vpack.c.b16 %v469, %v468
        %v483 = vpack.c.b16 %v471, %v470
        %v484 = vpack.c.b16 %v473, %v472
        %v485 = vpack.c.b16 %v475, %v474
        %v486 = vpack.c.b16 %v477, %v476
        %v487 = vpack.c.b16 %v479, %v478
        %v492 = vunpack.c.l.b16 %v332
        %v493 = vunpack.c.l.b16 %v333
        %v494 = vunpack.c.l.b16 %v334
        %v495 = vunpack.c.l.b16 %v335
        %v496 = vpack.c.b16 %v493, %v492
        %v497 = vpack.c.b16 %v495, %v494
        %vm500 = vcmask 261120
        %v502 = vsel %vm500, %v480, 0
        %v505 = vsel %vm500, %v481, 0
        %v508 = vsel %vm500, %v482, 0
        %v511 = vsel %vm500, %v483, 0
        %v514 = vsel %vm500, %v484, 0
        %v517 = vsel %vm500, %v485, 0
        %v520 = vsel %vm500, %v486, 0
        %v523 = vsel %vm500, %v487, 0
        %525 = vmatprep.subr.bf16.mxu0 0
        %526 = vmatpush1.bf16.msra.mxu0 %v496
        %527 = vmatprep.subr.bf16.mxu0 0
        %528 = vmatpush1.bf16.msra.mxu0 %v497
        %529 = vmatprep.subr.bf16.mxu0 0
        %530 = vmatpush1.bf16.msra.mxu0 0
        %531 = vmatprep.subr.bf16.mxu0 0
        %532 = vmatpush1.bf16.msra.mxu0 0
        %533 = vmatprep.subr.bf16.mxu0 0
        %534 = vmatpush1.bf16.msra.mxu0 0
        %535 = vmatprep.subr.bf16.mxu0 0
        %536 = vmatpush1.bf16.msra.mxu0 0
        %537 = vmatprep.subr.bf16.mxu0 0
        %538 = vmatpush1.bf16.msra.mxu0 0
        %539 = vmatprep.subr.bf16.mxu0 0
        %540 = vmatpush1.bf16.msra.mxu0 0
        %541 = vmatprep.subr.bf16.mxu0 0
        %542 = vmatpush1.bf16.msra.mxu0 0
        %543 = vmatprep.subr.bf16.mxu0 0
        %544 = vmatpush1.bf16.msra.mxu0 0
        %545 = vmatprep.subr.bf16.mxu0 0
        %546 = vmatpush1.bf16.msra.mxu0 0
        %547 = vmatprep.subr.bf16.mxu0 0
        %548 = vmatpush1.bf16.msra.mxu0 0
        %549 = vmatprep.subr.bf16.mxu0 0
        %550 = vmatpush1.bf16.msra.mxu0 0
        %551 = vmatprep.subr.bf16.mxu0 0
        %552 = vmatpush1.bf16.msra.mxu0 0
        %553 = vmatprep.subr.bf16.mxu0 0
        %554 = vmatpush1.bf16.msra.mxu0 0
        %555 = vmatprep.subr.bf16.mxu0 0
        %556 = vmatpush1.bf16.msra.mxu0 0
        %557 = vmatprep.mubr.bf16.mxu0 0
        %558 = vmatmul.mubr.bf16.gmra.mrb[0].mxu0 %v502
        %v559 = vpop.f32.mrb[0].mxu0
        %v560 = vadd.f32 %v371, %v559
        %v561 = vpop.f32.mrb[0].mxu0
        %v562 = vpop.f32.mrb[0].mxu0
        %v563 = vadd.f32 %v376, %v562
        %v564 = vpop.f32.mrb[0].mxu0
        %565 = vmatprep.mubr.bf16.mxu0 0
        %566 = vmatmul.mubr.bf16.gmra.mrb[0].mxu0 %v505
        %v567 = vpop.f32.mrb[0].mxu0
        %v568 = vadd.f32 %v381, %v567
        %v569 = vpop.f32.mrb[0].mxu0
        %v570 = vpop.f32.mrb[0].mxu0
        %v571 = vadd.f32 %v386, %v570
        %v572 = vpop.f32.mrb[0].mxu0
        %573 = vmatprep.mubr.bf16.mxu0 0
        %574 = vmatmul.mubr.bf16.gmra.mrb[0].mxu0 %v508
        %v575 = vpop.f32.mrb[0].mxu0
        %v576 = vadd.f32 %v391, %v575
        %v577 = vpop.f32.mrb[0].mxu0
        %v578 = vpop.f32.mrb[0].mxu0
        %v579 = vadd.f32 %v396, %v578
        %v580 = vpop.f32.mrb[0].mxu0
        %581 = vmatprep.mubr.bf16.mxu0 0
        %582 = vmatmul.mubr.bf16.gmra.mrb[0].mxu0 %v511
        %v583 = vpop.f32.mrb[0].mxu0
        %v584 = vadd.f32 %v401, %v583
        %v585 = vpop.f32.mrb[0].mxu0
        %v586 = vpop.f32.mrb[0].mxu0
        %v587 = vadd.f32 %v406, %v586
        %v588 = vpop.f32.mrb[0].mxu0
        %589 = vmatprep.mubr.bf16.mxu0 0
        %590 = vmatmul.mubr.bf16.gmra.mrb[0].mxu0 %v514
        %v591 = vpop.f32.mrb[0].mxu0
        %v592 = vadd.f32 %v411, %v591
        %v593 = vpop.f32.mrb[0].mxu0
        %v594 = vpop.f32.mrb[0].mxu0
        %v595 = vadd.f32 %v416, %v594
        %v596 = vpop.f32.mrb[0].mxu0
        %597 = vmatprep.mubr.bf16.mxu0 0
        %598 = vmatmul.mubr.bf16.gmra.mrb[0].mxu0 %v517
        %v599 = vpop.f32.mrb[0].mxu0
        %v600 = vadd.f32 %v421, %v599
        %v601 = vpop.f32.mrb[0].mxu0
        %v602 = vpop.f32.mrb[0].mxu0
        %v603 = vadd.f32 %v426, %v602
        %v604 = vpop.f32.mrb[0].mxu0
        %605 = vmatprep.mubr.bf16.mxu0 0
        %606 = vmatmul.mubr.bf16.gmra.mrb[0].mxu0 %v520
        %v607 = vpop.f32.mrb[0].mxu0
        %v608 = vadd.f32 %v431, %v607
        %v609 = vpop.f32.mrb[0].mxu0
        %v610 = vpop.f32.mrb[0].mxu0
        %v611 = vadd.f32 %v436, %v610
        %v612 = vpop.f32.mrb[0].mxu0
        %613 = vmatprep.mubr.bf16.mxu0 0
        %614 = vmatmul.mubr.bf16.gmra.mrb[0].mxu0 %v523
        %v615 = vpop.f32.mrb[0].mxu0
        %v616 = vadd.f32 %v441, %v615
        %v617 = vpop.f32.mrb[0].mxu0
        %v618 = vpop.f32.mrb[0].mxu0
        %v619 = vadd.f32 %v446, %v618
        %v620 = vpop.f32.mrb[0].mxu0
        %621 = vdwg.mxu0
        %v622 = vmax.f32 %v560, 0.0
        %v623 = vmax.f32 %v563, 0.0
        %v624 = vmax.f32 %v568, 0.0
        %v625 = vmax.f32 %v571, 0.0
        %v626 = vmax.f32 %v576, 0.0
        %v627 = vmax.f32 %v579, 0.0
        %v628 = vmax.f32 %v584, 0.0
        %v629 = vmax.f32 %v587, 0.0
        %v630 = vmax.f32 %v592, 0.0
        %v631 = vmax.f32 %v595, 0.0
        %v632 = vmax.f32 %v600, 0.0
        %v633 = vmax.f32 %v603, 0.0
        %v634 = vmax.f32 %v608, 0.0
        %v635 = vmax.f32 %v611, 0.0
        %v636 = vmax.f32 %v616, 0.0
        %v637 = vmax.f32 %v619, 0.0
        %v638 = vld [vmem:[%s3] sm:$0xf]
        %v639 = vld [vmem:[%s3 + $0x4] sm:$0xf]
        %v640 = vld [vmem:[%s3 + $0x8] sm:$0xf]
        %v641 = vld [vmem:[%s3 + $0xc] sm:$0xf]
        %v642 = vld [vmem:[%s3 + $0x10] sm:$0xf]
        %v643 = vld [vmem:[%s3 + $0x14] sm:$0xf]
        %v644 = vld [vmem:[%s3 + $0x18] sm:$0xf]
        %v645 = vld [vmem:[%s3 + $0x1c] sm:$0xf]
        %v646 = vld [vmem:[%s3 + $0x20] sm:$0xf]
        %v647 = vld [vmem:[%s3 + $0x24] sm:$0xf]
        %v648 = vld [vmem:[%s3 + $0x28] sm:$0xf]
        %v649 = vld [vmem:[%s3 + $0x2c] sm:$0xf]
        %v650 = vld [vmem:[%s3 + $0x30] sm:$0xf]
        %v651 = vld [vmem:[%s3 + $0x34] sm:$0xf]
        %v652 = vld [vmem:[%s3 + $0x38] sm:$0xf]
        %v653 = vld [vmem:[%s3 + $0x3c] sm:$0xf]
        %v654 = vpack.c.bf16 %v623, %v622
        %v655 = vpack.c.bf16 %v625, %v624
        %v656 = vpack.c.bf16 %v627, %v626
        %v657 = vpack.c.bf16 %v629, %v628
        %v658 = vpack.c.bf16 %v631, %v630
        %v659 = vpack.c.bf16 %v633, %v632
        %v660 = vpack.c.bf16 %v635, %v634
        %v661 = vpack.c.bf16 %v637, %v636
        %v662 = vld [vmem:[%s4] sm:$0xff]
        %v663 = vld [vmem:[%s4 + $0x8] sm:$0xff]
        %v664 = vld [vmem:[%s4 + $0x10] sm:$0xff]
        %v665 = vld [vmem:[%s4 + $0x18] sm:$0xff]
        %v666 = vld [vmem:[%s4 + $0x20] sm:$0xff]
        %v667 = vld [vmem:[%s4 + $0x28] sm:$0xff]
        %v668 = vld [vmem:[%s4 + $0x30] sm:$0xff]
        %v669 = vld [vmem:[%s4 + $0x38] sm:$0xff]
        %v670 = vld [vmem:[%s4 + $0x40] sm:$0xff]
        %v671 = vld [vmem:[%s4 + $0x48] sm:$0xff]
        %v672 = vld [vmem:[%s4 + $0x50] sm:$0xff]
        %v673 = vld [vmem:[%s4 + $0x58] sm:$0xff]
        %v674 = vld [vmem:[%s4 + $0x60] sm:$0xff]
        %v675 = vld [vmem:[%s4 + $0x68] sm:$0xff]
        %v676 = vld [vmem:[%s4 + $0x70] sm:$0xff]
        %v677 = vld [vmem:[%s4 + $0x78] sm:$0xff]
        %679 = vset.pattern.permute.xlu0 0
        %680 = vperm.xlu0 %679, %v662
        %v681 = vpop.permute.xlu0 %680
        %684 = vset.pattern.permute.xlu0 0
        %685 = vperm.xlu0 %684, %v663
        %v686 = vpop.permute.xlu0 %685
        %689 = vset.pattern.permute.xlu0 0
        %690 = vperm.xlu0 %689, %v664
        %v691 = vpop.permute.xlu0 %690
        %694 = vset.pattern.permute.xlu0 0
        %695 = vperm.xlu0 %694, %v665
        %v696 = vpop.permute.xlu0 %695
        %699 = vset.pattern.permute.xlu0 0
        %700 = vperm.xlu0 %699, %v666
        %v701 = vpop.permute.xlu0 %700
        %704 = vset.pattern.permute.xlu0 0
        %705 = vperm.xlu0 %704, %v667
        %v706 = vpop.permute.xlu0 %705
        %709 = vset.pattern.permute.xlu0 0
        %710 = vperm.xlu0 %709, %v668
        %v711 = vpop.permute.xlu0 %710
        %714 = vset.pattern.permute.xlu0 0
        %715 = vperm.xlu0 %714, %v669
        %v716 = vpop.permute.xlu0 %715
        %719 = vset.pattern.permute.xlu0 0
        %720 = vperm.xlu0 %719, %v670
        %v721 = vpop.permute.xlu0 %720
        %724 = vset.pattern.permute.xlu0 0
        %725 = vperm.xlu0 %724, %v671
        %v726 = vpop.permute.xlu0 %725
        %729 = vset.pattern.permute.xlu0 0
        %730 = vperm.xlu0 %729, %v672
        %v731 = vpop.permute.xlu0 %730
        %734 = vset.pattern.permute.xlu0 0
        %735 = vperm.xlu0 %734, %v673
        %v736 = vpop.permute.xlu0 %735
        %739 = vset.pattern.permute.xlu0 0
        %740 = vperm.xlu0 %739, %v674
        %v741 = vpop.permute.xlu0 %740
        %744 = vset.pattern.permute.xlu0 0
        %745 = vperm.xlu0 %744, %v675
        %v746 = vpop.permute.xlu0 %745
        %749 = vset.pattern.permute.xlu0 0
        %750 = vperm.xlu0 %749, %v676
        %v751 = vpop.permute.xlu0 %750
        %754 = vset.pattern.permute.xlu0 0
        %755 = vperm.xlu0 %754, %v677
        %v756 = vpop.permute.xlu0 %755
        %v774 = vunpack.c.l.b16 %v638
        %v775 = vunpack.c.l.b16 %v639
        %v776 = vunpack.c.l.b16 %v640
        %v777 = vunpack.c.l.b16 %v641
        %v778 = vunpack.c.l.b16 %v642
        %v779 = vunpack.c.l.b16 %v643
        %v780 = vunpack.c.l.b16 %v644
        %v781 = vunpack.c.l.b16 %v645
        %v782 = vunpack.c.l.b16 %v646
        %v783 = vunpack.c.l.b16 %v647
        %v784 = vunpack.c.l.b16 %v648
        %v785 = vunpack.c.l.b16 %v649
        %v786 = vunpack.c.l.b16 %v650
        %v787 = vunpack.c.l.b16 %v651
        %v788 = vunpack.c.l.b16 %v652
        %v789 = vunpack.c.l.b16 %v653
        %v790 = vpack.c.b16 %v775, %v774
        %v791 = vpack.c.b16 %v777, %v776
        %v792 = vpack.c.b16 %v779, %v778
        %v793 = vpack.c.b16 %v781, %v780
        %v794 = vpack.c.b16 %v783, %v782
        %v795 = vpack.c.b16 %v785, %v784
        %v796 = vpack.c.b16 %v787, %v786
        %v797 = vpack.c.b16 %v789, %v788
        %806 = vmatprep.subr.bf16.mxu0 0
        %807 = vmatpush1.bf16.msra.mxu0 %v654
        %808 = vmatprep.subr.bf16.mxu0 0
        %809 = vmatpush1.bf16.msra.mxu0 %v655
        %810 = vmatprep.subr.bf16.mxu0 0
        %811 = vmatpush1.bf16.msra.mxu0 %v656
        %812 = vmatprep.subr.bf16.mxu0 0
        %813 = vmatpush1.bf16.msra.mxu0 %v657
        %814 = vmatprep.subr.bf16.mxu0 0
        %815 = vmatpush1.bf16.msra.mxu0 %v658
        %816 = vmatprep.subr.bf16.mxu0 0
        %817 = vmatpush1.bf16.msra.mxu0 %v659
        %818 = vmatprep.subr.bf16.mxu0 0
        %819 = vmatpush1.bf16.msra.mxu0 %v660
        %820 = vmatprep.subr.bf16.mxu0 0
        %821 = vmatpush1.bf16.msra.mxu0 %v661
        %822 = vmatprep.subr.bf16.mxu0 0
        %823 = vmatpush1.bf16.msra.mxu0 0
        %824 = vmatprep.subr.bf16.mxu0 0
        %825 = vmatpush1.bf16.msra.mxu0 0
        %826 = vmatprep.subr.bf16.mxu0 0
        %827 = vmatpush1.bf16.msra.mxu0 0
        %828 = vmatprep.subr.bf16.mxu0 0
        %829 = vmatpush1.bf16.msra.mxu0 0
        %830 = vmatprep.subr.bf16.mxu0 0
        %831 = vmatpush1.bf16.msra.mxu0 0
        %832 = vmatprep.subr.bf16.mxu0 0
        %833 = vmatpush1.bf16.msra.mxu0 0
        %834 = vmatprep.subr.bf16.mxu0 0
        %835 = vmatpush1.bf16.msra.mxu0 0
        %836 = vmatprep.subr.bf16.mxu0 0
        %837 = vmatpush1.bf16.msra.mxu0 0
        %838 = vmatprep.mubr.bf16.mxu0 0
        %839 = vmatmul.mubr.bf16.gmra.mrb[0].mxu0 %v790
        %v840 = vpop.f32.mrb[0].mxu0
        %v841 = vadd.f32 %v681, %v840
        %v842 = vpop.f32.mrb[0].mxu0
        %v843 = vpop.f32.mrb[0].mxu0
        %v844 = vadd.f32 %v686, %v843
        %v845 = vpop.f32.mrb[0].mxu0
        %846 = vmatprep.mubr.bf16.mxu0 0
        %847 = vmatmul.mubr.bf16.gmra.mrb[0].mxu0 %v791
        %v848 = vpop.f32.mrb[0].mxu0
        %v849 = vadd.f32 %v691, %v848
        %v850 = vpop.f32.mrb[0].mxu0
        %v851 = vpop.f32.mrb[0].mxu0
        %v852 = vadd.f32 %v696, %v851
        %v853 = vpop.f32.mrb[0].mxu0
        %854 = vmatprep.mubr.bf16.mxu0 0
        %855 = vmatmul.mubr.bf16.gmra.mrb[0].mxu0 %v792
        %v856 = vpop.f32.mrb[0].mxu0
        %v857 = vadd.f32 %v701, %v856
        %v858 = vpop.f32.mrb[0].mxu0
        %v859 = vpop.f32.mrb[0].mxu0
        %v860 = vadd.f32 %v706, %v859
        %v861 = vpop.f32.mrb[0].mxu0
        %862 = vmatprep.mubr.bf16.mxu0 0
        %863 = vmatmul.mubr.bf16.gmra.mrb[0].mxu0 %v793
        %v864 = vpop.f32.mrb[0].mxu0
        %v865 = vadd.f32 %v711, %v864
        %v866 = vpop.f32.mrb[0].mxu0
        %v867 = vpop.f32.mrb[0].mxu0
        %v868 = vadd.f32 %v716, %v867
        %v869 = vpop.f32.mrb[0].mxu0
        %870 = vmatprep.mubr.bf16.mxu0 0
        %871 = vmatmul.mubr.bf16.gmra.mrb[0].mxu0 %v794
        %v872 = vpop.f32.mrb[0].mxu0
        %v873 = vadd.f32 %v721, %v872
        %v874 = vpop.f32.mrb[0].mxu0
        %v875 = vpop.f32.mrb[0].mxu0
        %v876 = vadd.f32 %v726, %v875
        %v877 = vpop.f32.mrb[0].mxu0
        %878 = vmatprep.mubr.bf16.mxu0 0
        %879 = vmatmul.mubr.bf16.gmra.mrb[0].mxu0 %v795
        %v880 = vpop.f32.mrb[0].mxu0
        %v881 = vadd.f32 %v731, %v880
        %v882 = vpop.f32.mrb[0].mxu0
        %v883 = vpop.f32.mrb[0].mxu0
        %v884 = vadd.f32 %v736, %v883
        %v885 = vpop.f32.mrb[0].mxu0
        %886 = vmatprep.mubr.bf16.mxu0 0
        %887 = vmatmul.mubr.bf16.gmra.mrb[0].mxu0 %v796
        %v888 = vpop.f32.mrb[0].mxu0
        %v889 = vadd.f32 %v741, %v888
        %v890 = vpop.f32.mrb[0].mxu0
        %v891 = vpop.f32.mrb[0].mxu0
        %v892 = vadd.f32 %v746, %v891
        %v893 = vpop.f32.mrb[0].mxu0
        %894 = vmatprep.mubr.bf16.mxu0 0
        %895 = vmatmul.mubr.bf16.gmra.mrb[0].mxu0 %v797
        %v896 = vpop.f32.mrb[0].mxu0
        %v897 = vadd.f32 %v751, %v896
        %v898 = vpop.f32.mrb[0].mxu0
        %v899 = vpop.f32.mrb[0].mxu0
        %v900 = vadd.f32 %v756, %v899
        %v901 = vpop.f32.mrb[0].mxu0
        %902 = vdwg.mxu0
        %v903 = vmax.f32 %v841, 0.0
        %v904 = vmax.f32 %v844, 0.0
        %v905 = vmax.f32 %v849, 0.0
        %v906 = vmax.f32 %v852, 0.0
        %v907 = vmax.f32 %v857, 0.0
        %v908 = vmax.f32 %v860, 0.0
        %v909 = vmax.f32 %v865, 0.0
        %v910 = vmax.f32 %v868, 0.0
        %v911 = vmax.f32 %v873, 0.0
        %v912 = vmax.f32 %v876, 0.0
        %v913 = vmax.f32 %v881, 0.0
        %v914 = vmax.f32 %v884, 0.0
        %v915 = vmax.f32 %v889, 0.0
        %v916 = vmax.f32 %v892, 0.0
        %v917 = vmax.f32 %v897, 0.0
        %v918 = vmax.f32 %v900, 0.0
        %v919 = vld [vmem:[%s5] sm:$0x1]
        %v920 = vpack.c.bf16 %v904, %v903
        %v921 = vpack.c.bf16 %v906, %v905
        %v922 = vpack.c.bf16 %v908, %v907
        %v923 = vpack.c.bf16 %v910, %v909
        %v924 = vpack.c.bf16 %v912, %v911
        %v925 = vpack.c.bf16 %v914, %v913
        %v926 = vpack.c.bf16 %v916, %v915
        %v927 = vpack.c.bf16 %v918, %v917
        %v928 = vld [vmem:[#allocation2] sm:$0x1]
        %930 = vset.pattern.permute.xlu0 0
        %931 = vperm.xlu0 %930, %v928
        %v932 = vpop.permute.xlu0 %931
        %v934 = vlaneseq
        %v935 = vshrl.u32 %v934, 7
        %v936 = vsub.s32 0, %v935
        %v937 = vrot.slane %v932, %v936
        %938 = vmatprep.subr.bf16.mxu0 0
        %939 = vmatpush1.bf16.msra.mxu0 %v920
        %940 = vmatprep.subr.bf16.mxu0 0
        %941 = vmatpush1.bf16.msra.mxu0 %v921
        %942 = vmatprep.subr.bf16.mxu0 0
        %943 = vmatpush1.bf16.msra.mxu0 %v922
        %944 = vmatprep.subr.bf16.mxu0 0
        %945 = vmatpush1.bf16.msra.mxu0 %v923
        %946 = vmatprep.subr.bf16.mxu0 0
        %947 = vmatpush1.bf16.msra.mxu0 %v924
        %948 = vmatprep.subr.bf16.mxu0 0
        %949 = vmatpush1.bf16.msra.mxu0 %v925
        %950 = vmatprep.subr.bf16.mxu0 0
        %951 = vmatpush1.bf16.msra.mxu0 %v926
        %952 = vmatprep.subr.bf16.mxu0 0
        %953 = vmatpush1.bf16.msra.mxu0 %v927
        %954 = vmatprep.subr.bf16.mxu0 0
        %955 = vmatpush1.bf16.msra.mxu0 0
        %956 = vmatprep.subr.bf16.mxu0 0
        %957 = vmatpush1.bf16.msra.mxu0 0
        %958 = vmatprep.subr.bf16.mxu0 0
        %959 = vmatpush1.bf16.msra.mxu0 0
        %960 = vmatprep.subr.bf16.mxu0 0
        %961 = vmatpush1.bf16.msra.mxu0 0
        %962 = vmatprep.subr.bf16.mxu0 0
        %963 = vmatpush1.bf16.msra.mxu0 0
        %964 = vmatprep.subr.bf16.mxu0 0
        %965 = vmatpush1.bf16.msra.mxu0 0
        %966 = vmatprep.subr.bf16.mxu0 0
        %967 = vmatpush1.bf16.msra.mxu0 0
        %968 = vmatprep.subr.bf16.mxu0 0
        %969 = vmatpush1.bf16.msra.mxu0 0
        %970 = vmatprep.mubr.bf16.mxu0 0
        %971 = vmatmul.mubr.bf16.gmra.mrb[0].mxu0 %v919
        %v972 = vpop.f32.mrb[0].mxu0
        %v973 = vadd.f32 %v937, %v972
        %v974 = vpop.f32.mrb[0].mxu0
        %v975 = vpop.f32.mrb[0].mxu0
        %v976 = vpop.f32.mrb[0].mxu0
        %977 = vdwg.mxu0
        %v978 = vsub.f32 0.0, %v973
        %v979 = vmul.f32 %v978, 1.442695
        %v980 = vpow.pop %v979
        %v981 = vadd.f32 %v980, 1.0
        %v982 = vrcp.pop %v981
        %983 = vst [vmem:[%s330] sm:$0x1] %v982
        %s984 = sand.u32 %s183, 1
        %s985 = scalar_lea.sflag [#allocation5], %s984
        %s986 = sand.u32 %s183, 1
        %s987 = scalar_lea.vmem [#allocation4], %s986
        // Predicated region
        $region90: #{tpu_custom_call.1} parent=84 // pred_check
          %p988 = pneg %p193
        $region91: #{tpu_custom_call.1} parent=84 // pred_check_branch
          %990 = sbr.rel (%p988) target = $region93
        $region92: #{tpu_custom_call.1} parent=84 // pred_region
          %s992 = ssub.s32 16, 16
          %993 = vsyncadd %s985, %s992
          %s994 = smul.addr %s23, 16
          %s995 = scalar_lea.hbm %s7, %s994
          %s997 = sshll.u32 %s987, 4
          %s998 = int_to_ptr.vmem [resolvable:$true] %s997
          %1000 = dma.vmem_to_hbm [thread:$0]  %s998, 16, %s995, %s985
        $region93: #{tpu_custom_call.1} parent=84 // pred_fallthru
          _
      $region85: #{tpu_custom_call.1} parent=5 // pred_fallthru
        _
      %p1001 = scmp.le.s32.totalorder 2, %s18
      // Predicated region
      $region94: #{tpu_custom_call.1} parent=5 // pred_check
        %p1002 = pneg %p1001
      $region95: #{tpu_custom_call.1} parent=5 // pred_check_branch
        %1004 = sbr.rel (%p1002) target = $region97
      $region96: #{tpu_custom_call.1} parent=5 // pred_region
        %s1005 = ssub.s32 %s18, 2
        // Predicated region
        $region98: #{tpu_custom_call.1} parent=96 // pred_check
          %p1006 = pneg %p199
        $region99: #{tpu_custom_call.1} parent=96 // pred_check_branch
          %1008 = sbr.rel (%p1006) target = $region101
        $region100: #{tpu_custom_call.1} parent=96 // pred_region
          %s1009 = sand.u32 %s184, 1
          %s1010 = scalar_lea.sflag [#allocation5], %s1009
          %s1011 = sand.u32 %s184, 1
          %s1012 = scalar_lea.vmem [#allocation4], %s1011
          %1013 = dma.done %s1010, 16
        $region101: #{tpu_custom_call.1} parent=96 // pred_fallthru
          _
      $region97: #{tpu_custom_call.1} parent=5 // pred_fallthru
        _
    $region6: #{tpu_custom_call.1} parent=1 // loop_footer
      %s22 = sadd.s32 1, %s18
    $region7: #{tpu_custom_call.1} parent=1 // loop_footer_branch
      %17 = sbr.rel target = $region3
    $region8: #{tpu_custom_call.1} parent=1 // loop_exit
      _
    %1014 = vsyncpa [#allocation5], 1
    %s1015 = scalar_lea.sflag [#allocation5], 1
    %1016 = vsyncpa %s1015, 1

</llo_original>
